<compile_context>
chip_gen: v5e
topology: v5e:2x2
jax: 0.10.0
libtpu: 0.0.40
codegen_flags: <defaults>
</compile_context>

<pallas_src>
import jax
import jax.numpy as jnp
from jax.experimental import pallas as pl
from jax.experimental.pallas import tpu as pltpu

SCALE = (2, 1, 1)  # matches Upsampling(scale=(2, 1, 1)) default


# ---------------------------------------------------------------------------
# Kernels
# ---------------------------------------------------------------------------
def _make_dense_kernel(sd, hw):
    """Lane-dense path: x (TD, HW) -> o (TD, sd*HW), sd aligned slice stores."""
    def kernel(x_ref, o_ref):
        x = x_ref[...]
        for j in range(sd):
            # hw is a multiple of 128 -> lane-aligned, unmasked full-width stores
            o_ref[:, j * hw:(j + 1) * hw] = x
    return kernel


def _make_fallback_kernel(sd):
    """General path: x (TD, 1, HW) -> o (TD, sd, HW)."""
    def kernel(x_ref, o_ref):
        x = x_ref[:, 0, :]
        for j in range(sd):
            o_ref[:, j, :] = x
    return kernel


# ---------------------------------------------------------------------------
# Tiling helpers
# ---------------------------------------------------------------------------
def _round_up(x, m):
    return ((x + m - 1) // m) * m


def _block_target_bytes():
    """Per-input-block byte target, sized by VMEM capacity (v7x has only 64 MiB)."""
    try:
        vmem = pltpu.get_tpu_info().vmem_capacity_bytes
    except Exception:
        vmem = 64 << 20
    return (4 << 20) if vmem > (96 << 20) else (2 << 20)


def _choose_row_tile(r, hw, itemsize):
    """Pick TD (rows per block).

    Constraints / goals:
      * multiple of the sublane pack (8 for f32, 16 for bf16, 32 for int8),
      * input block close to (but not above) the byte target,
      * grid length >= 2 when possible (megacore on v7x),
      * TD divides r so every block's DMA/stores are fully dense.
    """
    sub = max(8, 32 // itemsize)
    target_bytes = _block_target_bytes()
    max_td = max(sub, (target_bytes // max(1, hw * itemsize)) // sub * sub)
    if r >= 2 * sub:
        # cap so the 'parallel' grid axis has at least 2 steps
        max_td = min(max_td, _round_up(-(-r // 2), sub))
    if r <= max_td:
        return r  # full-dim block is always legal
    # largest multiple of sub, <= max_td, that divides r (no ragged tail)
    start = max_td - (max_td % sub)
    for cand in range(start, 0, -sub):
        if r % cand == 0:
            return cand
    # no such divisor: accept a ragged trailing block (Pallas masks it)
    return max(start, sub)


# ---------------------------------------------------------------------------
# Wrapper
# ---------------------------------------------------------------------------
def upsampling_nearest(x, scale=SCALE):
    """Nearest-neighbor upsampling of a 5-D NCDHW tensor by scale=(sd, 1, 1)."""
    sd, sh, sw = scale
    # TODO(synk): only depth upsampling (scale=(sd,1,1)) is implemented, matching the module default.
    assert sh == 1 and sw == 1, "only depth upsampling implemented (scale=(sd,1,1))"
    n, c, d, h, w = x.shape

    r = n * c * d
    hw = h * w
    itemsize = jnp.dtype(x.dtype).itemsize

    td = _choose_row_tile(r, hw, itemsize)
    grid = (pl.cdiv(r, td),)

    block_in_bytes = td * hw * itemsize
    # double-buffered input + output pipeline buffers, plus headroom
    vmem_budget = 2 * (1 + sd) * block_in_bytes + (8 << 20)
    vmem_limit = int(min(48 << 20, max(16 << 20, vmem_budget)))

    cost = pl.CostEstimate(
        flops=0,
        transcendentals=0,
        bytes_accessed=(1 + sd) * r * hw * itemsize,
    )
    cparams = pltpu.CompilerParams(
        dimension_semantics=("parallel",),
        vmem_limit_bytes=vmem_limit,
    )

    if hw % 128 == 0:
        # Lane-dense fast path: fully flattened 2-D views.
        x2 = x.reshape(r, hw)
        out = pl.pallas_call(
            _make_dense_kernel(sd, hw),
            out_shape=jax.ShapeDtypeStruct((r, sd * hw), x.dtype),
            grid_spec=pltpu.PrefetchScalarGridSpec(
                num_scalar_prefetch=0,
                grid=grid,
                in_specs=[pl.BlockSpec((td, hw), lambda i: (i, 0))],
                out_specs=pl.BlockSpec((td, sd * hw), lambda i: (i, 0)),
            ),
            compiler_params=cparams,
            cost_estimate=cost,
        )(x2)
    else:
        # General path: keep last two dims at full extent (always legal tiling).
        x3 = x.reshape(r, 1, hw)
        out = pl.pallas_call(
            _make_fallback_kernel(sd),
            out_shape=jax.ShapeDtypeStruct((r, sd, hw), x.dtype),
            grid_spec=pltpu.PrefetchScalarGridSpec(
                num_scalar_prefetch=0,
                grid=grid,
                in_specs=[pl.BlockSpec((td, 1, hw), lambda i: (i, 0, 0))],
                out_specs=pl.BlockSpec((td, sd, hw), lambda i: (i, 0, 0)),
            ),
            compiler_params=cparams,
            cost_estimate=cost,
        )(x3)

    # (r, sd*hw) / (r, sd, hw) row-major == (n, c, d, sd, h, w) row-major
    #                                    == (n, c, sd*d, h, w)  -> free reshape
    return out.reshape(n, c, d * sd, h, w)


def upsampling_ref(x, scale=SCALE):
    # Pure-JAX reference: nearest interpolation along depth only.
    return jnp.repeat(x, scale[0], axis=2)


if __name__ == "__main__":
    key = jax.random.PRNGKey(0)
    # (N, C, D, H, W) -- small 5-D input consistent with a 3-tuple scale_factor
    x = jax.random.normal(key, (2, 4, 8, 16, 16), dtype=jnp.float32)

    out = jax.block_until_ready(upsampling_nearest(x))

    ref = upsampling_ref(x)
    assert out.shape == (2, 4, 16, 16, 16), out.shape
    assert jnp.array_equal(out, ref), "mismatch vs reference nearest upsampling"

    print("KERNEL_OK")
</pallas_src>

<mosaic_0001>
module attributes {stable_mosaic.version = 11 : i64} {
  func.func @kernel(%arg0: i32, %arg1: memref<32x256xf32, #tpu.memory_space<vmem>>, %arg2: memref<32x512xf32, #tpu.memory_space<vmem>>) attributes {dimension_semantics = [#tpu.dimension_semantics<parallel>], iteration_bounds = array<i64: 2>, scalar_prefetch = 0 : i64, scratch_operands = 0 : i64, tpu.core_type = #tpu.core_type<tc>, window_params = [{transform_indices = @transform_0, window_bounds = array<i64: 32, 256>}, {transform_indices = @transform_1, window_bounds = array<i64: 32, 512>}]} {
    %c0 = arith.constant 0 : index
    %c0_0 = arith.constant 0 : index
    %0 = vector.load %arg1[%c0, %c0_0] : memref<32x256xf32, #tpu.memory_space<vmem>>, vector<32x256xf32>
    %c0_1 = arith.constant 0 : index
    %c0_2 = arith.constant 0 : index
    %1 = vector.load %arg2[%c0_1, %c0_2] : memref<32x512xf32, #tpu.memory_space<vmem>>, vector<32x256xf32>
    tpu.vector_store %arg2[%c0_1, %c0_2], %0 {strides = array<i32>} : memref<32x512xf32, #tpu.memory_space<vmem>>, vector<32x256xf32>,
    %c0_3 = arith.constant 0 : index
    %c256 = arith.constant 256 : index
    %2 = vector.load %arg2[%c0_3, %c256] : memref<32x512xf32, #tpu.memory_space<vmem>>, vector<32x256xf32>
    tpu.vector_store %arg2[%c0_3, %c256], %0 {strides = array<i32>} : memref<32x512xf32, #tpu.memory_space<vmem>>, vector<32x256xf32>,
    return
  }
  func.func @transform_0(%arg0: i32) -> (i32, i32) {
    %c0_i32 = arith.constant 0 : i32
    %c0_i32_0 = arith.constant 0 : i32
    return %arg0, %c0_i32 : i32, i32
  }
  func.func @transform_1(%arg0: i32) -> (i32, i32) {
    %c0_i32 = arith.constant 0 : i32
    %c0_i32_0 = arith.constant 0 : i32
    return %arg0, %c0_i32 : i32, i32
  }
}

</mosaic_0001>

<llo_original>
// kernel: tpu_custom_call.1
$region0: #{tpu_custom_call.1}
  #allocation0 [shape = 'u32[]', space=smem, size = 0x4, offset = 0x4, fixed_abs, tag = 'smem constant byte address 0x4 - core index']
  #allocation1 [shape = 'u32[72,128]{1,0:T(1,128)}', space=vmem, size = 0x9000, scoped, tag = 'internal scratch']
  %s0 = inlined_call_operand.hbm [shape: f32[64,256], index: 0, kind: input, shape index: {}]
  %s1 = inlined_call_operand.hbm [shape: f32[64,512], index: 1, kind: output, shape index: {}]
  %s2 = sld [smem:[#allocation0]]
  $region41: #{tpu_custom_call.1} parent=0
    _
  %s4 = ssub.s32 1, %s2
  %s5 = scalar_select 0, %s4, %s2
  $region1: #{tpu_custom_call.1} parent=0
    #allocation2 [shape = 'u8[65536]{0}', space=vmem, size = 0x10000, scoped, tag = 'input window, operand 0']
    #allocation3 [shape = 's32[2]{0}', space=sflag, size = 0x8, scoped, tag = 'scoped memory for tpu_custom_call.1']
    #allocation4 [shape = 's32[2]{0}', space=sflag, size = 0x8, scoped, tag = 'scoped memory for tpu_custom_call.1']
    #allocation5 [shape = 'u8[131072]{0}', space=vmem, size = 0x20000, scoped, tag = 'output window, operand 0']
    %6 = vsyncpa [#allocation3], 0
    %s7 = scalar_lea.sflag [#allocation3], 1
    %8 = vsyncpa %s7, 0
    %9 = vsyncpa [#allocation4], 0
    %s10 = scalar_lea.sflag [#allocation4], 1
    %11 = vsyncpa %s10, 0
    loop: start=0, step=1, limit=4
    $region2: #{tpu_custom_call.1} parent=1 // loop_pre_header
      _
    $region3: #{tpu_custom_call.1} parent=1 // loop_header
      %s13 = sphi 0, %s17
      %p14 = scmp.ge.s32.totalorder %s13, 4
      %s23 = sphi 0, %s25
      %s26 = sphi 0, %s23
      %s27 = sphi 0, %s26
      %s43 = sphi 0, %s27
      %s49 = sphi 0, %s51
      %s52 = sphi 0, %s49
      %s53 = sphi 0, %s52
      %s69 = sphi 0, %s53
    $region4: #{tpu_custom_call.1} parent=1 // loop_header_branch
      %16 = sbr.rel (%p14) target = $region8
    $region5: #{tpu_custom_call.1} parent=1 // loop_body
      %s18 = ssub.s32 %s13, 1
      %s19 = ssub.s32 %s13, 2
      %s20 = sadd.s32 %s13, 1
      %s21 = ssub.s32 %s13, %s20
      %p22 = scmp.eq.s32.totalorder %s21, 0
      %s24 = sadd.s32 %s23, 1
      %s25 = scalar_select %p22, %s23, %s24
      %p28 = pneg %p22
      %p29 = scmp.eq.s32.totalorder %s13, 1
      %p30 = por %p28, %p29
      %p31 = scmp.ne.s32.totalorder %s23, %s26
      %p32 = scmp.eq.s32.totalorder %s13, 0
      %p33 = por %p31, %p32
      %p34 = scmp.ne.s32.totalorder %s23, %s26
      %p35 = scmp.eq.s32.totalorder %s18, 1
      %p36 = por %p34, %p35
      %p37 = scmp.ne.s32.totalorder %s26, %s27
      %p38 = scmp.eq.s32.totalorder %s18, 0
      %p39 = por %p37, %p38
      %p40 = scmp.ne.s32.totalorder %s26, %s27
      %p41 = scmp.eq.s32.totalorder %s19, 1
      %p42 = por %p40, %p41
      %p44 = scmp.ne.s32.totalorder %s27, %s43
      %p45 = scmp.eq.s32.totalorder %s19, 0
      %p46 = por %p44, %p45
      %s47 = ssub.s32 %s13, %s20
      %p48 = scmp.eq.s32.totalorder %s47, 0
      %s50 = sadd.s32 %s49, 1
      %s51 = scalar_select %p48, %s49, %s50
      %p54 = pneg %p48
      %p55 = scmp.eq.s32.totalorder %s13, 1
      %p56 = por %p54, %p55
      %p57 = scmp.ne.s32.totalorder %s49, %s52
      %p58 = scmp.eq.s32.totalorder %s13, 0
      %p59 = por %p57, %p58
      %p60 = scmp.ne.s32.totalorder %s49, %s52
      %p61 = scmp.eq.s32.totalorder %s18, 1
      %p62 = por %p60, %p61
      %p63 = scmp.ne.s32.totalorder %s52, %s53
      %p64 = scmp.eq.s32.totalorder %s18, 0
      %p65 = por %p63, %p64
      %p66 = scmp.ne.s32.totalorder %s52, %s53
      %p67 = scmp.eq.s32.totalorder %s19, 1
      %p68 = por %p66, %p67
      %p70 = scmp.ne.s32.totalorder %s53, %s69
      %p71 = scmp.eq.s32.totalorder %s19, 0
      %p72 = por %p70, %p71
      %p73 = scmp.le.s32.totalorder 1, %s13
      %p74 = scmp.lt.s32.totalorder %s13, 3
      %p75 = pnand %p73, %p74
      %p76 = pneg %p75
      // Predicated region
      $region9: #{tpu_custom_call.1} parent=5 // pred_check
        _
      $region10: #{tpu_custom_call.1} parent=5 // pred_check_branch
        %78 = sbr.rel (%p75) target = $region12
      $region11: #{tpu_custom_call.1} parent=5 // pred_region
        %s79 = ssub.s32 %s13, 1
      $region12: #{tpu_custom_call.1} parent=5 // pred_fallthru
        _
      %p80 = scmp.lt.s32.totalorder %s13, 2
      // Predicated region
      $region13: #{tpu_custom_call.1} parent=5 // pred_check
        %p81 = pneg %p80
      $region14: #{tpu_custom_call.1} parent=5 // pred_check_branch
        %83 = sbr.rel (%p81) target = $region16
      $region15: #{tpu_custom_call.1} parent=5 // pred_region
        // Predicated region
        $region17: #{tpu_custom_call.1} parent=15 // pred_check
          %p84 = pneg %p33
        $region18: #{tpu_custom_call.1} parent=15 // pred_check_branch
          %86 = sbr.rel (%p84) target = $region20
        $region19: #{tpu_custom_call.1} parent=15 // pred_region
          %s87 = sand.u32 %s23, 1
          %s88 = scalar_lea.sflag [#allocation3], %s87
          %s89 = sand.u32 %s23, 1
          %s90 = smul.addr %s89, 64
          %s91 = scalar_lea.vmem [#allocation2], %s90
          %s92 = smul.u32 4, %s13
          %94 = vsyncadd %s88, 0
          %s95 = smul.addr %s92, 2
          %s96 = smul.addr %s95, 8
          %s97 = scalar_lea.hbm %s0, %s96
          %s98 = sshll.u32 %s97, 4
          %s99 = int_to_ptr.hbm [resolvable:$true] %s98
          %s100 = sshll.u32 %s91, 4
          %s101 = int_to_ptr.vmem [resolvable:$true] %s100
          %106 = dma.hbm_to_vmem [thread:$0]  %s99, 1024, %s101, %s88, 256, 256, 16
        $region20: #{tpu_custom_call.1} parent=15 // pred_fallthru
          _
      $region16: #{tpu_custom_call.1} parent=5 // pred_fallthru
        _
      %p107 = scmp.le.s32.totalorder 1, %s13
      %p108 = scmp.lt.s32.totalorder %s13, 3
      %p109 = pnand %p107, %p108
      %p110 = pneg %p109
      // Predicated region
      $region21: #{tpu_custom_call.1} parent=5 // pred_check
        _
      $region22: #{tpu_custom_call.1} parent=5 // pred_check_branch
        %112 = sbr.rel (%p109) target = $region24
      $region23: #{tpu_custom_call.1} parent=5 // pred_region
        %s113 = ssub.s32 %s13, 1
        %s114 = sand.u32 %s26, 1
        %s115 = scalar_lea.sflag [#allocation3], %s114
        %s116 = sand.u32 %s26, 1
        %s117 = smul.addr %s116, 64
        %s118 = scalar_lea.vmem [#allocation2], %s117
        // Predicated region
        $region25: #{tpu_custom_call.1} parent=23 // pred_check
          %p119 = pneg %p39
        $region26: #{tpu_custom_call.1} parent=23 // pred_check_branch
          %121 = sbr.rel (%p119) target = $region28
        $region27: #{tpu_custom_call.1} parent=23 // pred_region
          %123 = dma.done %s115, 1024
        $region28: #{tpu_custom_call.1} parent=23 // pred_fallthru
          _
        %s124 = sand.u32 %s26, 1
        %s125 = scalar_lea.sflag [#allocation3], %s124
        %s126 = sand.u32 %s26, 1
        %s127 = smul.addr %s126, 64
        %s128 = scalar_lea.vmem [#allocation2], %s127
        %p129 = pneg %p39
        %p130 = pneg %p36
        %p131 = pneg %p65
        %p132 = pneg %p62
        %s133 = sand.u32 %s52, 1
        %s134 = scalar_lea.sflag [#allocation4], %s133
        %s135 = sand.u32 %s52, 1
        %s136 = smul.addr %s135, 128
        %s137 = scalar_lea.vmem [#allocation5], %s136
        %s138 = smul.u32 4, %s18
        %s139 = smul.u32 4, %s18
        %v140 = vld [vmem:[%s118] sm:$0xff]
        %v141 = vld [vmem:[%s118 + $0x8] sm:$0xff]
        %v142 = vld [vmem:[%s118 + $0x10] sm:$0xff]
        %v143 = vld [vmem:[%s118 + $0x18] sm:$0xff]
        %v144 = vld [vmem:[%s118 + $0x20] sm:$0xff]
        %v145 = vld [vmem:[%s118 + $0x28] sm:$0xff]
        %v146 = vld [vmem:[%s118 + $0x30] sm:$0xff]
        %v147 = vld [vmem:[%s118 + $0x38] sm:$0xff]
        %148 = vst [vmem:[%s137] sm:$0xff] %v140
        %149 = vst [vmem:[%s137 + $0x8] sm:$0xff] %v141
        %150 = vst [vmem:[%s137 + $0x20] sm:$0xff] %v142
        %151 = vst [vmem:[%s137 + $0x28] sm:$0xff] %v143
        %152 = vst [vmem:[%s137 + $0x40] sm:$0xff] %v144
        %153 = vst [vmem:[%s137 + $0x48] sm:$0xff] %v145
        %154 = vst [vmem:[%s137 + $0x60] sm:$0xff] %v146
        %155 = vst [vmem:[%s137 + $0x68] sm:$0xff] %v147
        %156 = vst [vmem:[%s137 + $0x10] sm:$0xff] %v140
        %157 = vst [vmem:[%s137 + $0x18] sm:$0xff] %v141
        %158 = vst [vmem:[%s137 + $0x30] sm:$0xff] %v142
        %159 = vst [vmem:[%s137 + $0x38] sm:$0xff] %v143
        %160 = vst [vmem:[%s137 + $0x50] sm:$0xff] %v144
        %161 = vst [vmem:[%s137 + $0x58] sm:$0xff] %v145
        %162 = vst [vmem:[%s137 + $0x70] sm:$0xff] %v146
        %163 = vst [vmem:[%s137 + $0x78] sm:$0xff] %v147
        %s164 = sand.u32 %s52, 1
        %s165 = scalar_lea.sflag [#allocation4], %s164
        %s166 = sand.u32 %s52, 1
        %s167 = smul.addr %s166, 128
        %s168 = scalar_lea.vmem [#allocation5], %s167
        // Predicated region
        $region29: #{tpu_custom_call.1} parent=23 // pred_check
          %p169 = pneg %p62
        $region30: #{tpu_custom_call.1} parent=23 // pred_check_branch
          %171 = sbr.rel (%p169) target = $region32
        $region31: #{tpu_custom_call.1} parent=23 // pred_region
          %s172 = smul.u32 4, %s18
          %174 = vsyncadd %s165, 0
          %s175 = smul.addr %s172, 4
          %s176 = smul.addr %s175, 8
          %s177 = scalar_lea.hbm %s1, %s176
          %s178 = sshll.u32 %s168, 4
          %s179 = int_to_ptr.vmem [resolvable:$true] %s178
          %s180 = sshll.u32 %s177, 4
          %s181 = int_to_ptr.hbm [resolvable:$true] %s180
          %186 = dma.vmem_to_hbm [thread:$0]  %s179, 2048, %s181, %s165, 512, 512, 32
        $region32: #{tpu_custom_call.1} parent=23 // pred_fallthru
          _
      $region24: #{tpu_custom_call.1} parent=5 // pred_fallthru
        _
      %p187 = scmp.le.s32.totalorder 2, %s13
      // Predicated region
      $region33: #{tpu_custom_call.1} parent=5 // pred_check
        %p188 = pneg %p187
      $region34: #{tpu_custom_call.1} parent=5 // pred_check_branch
        %190 = sbr.rel (%p188) target = $region36
      $region35: #{tpu_custom_call.1} parent=5 // pred_region
        %s191 = ssub.s32 %s13, 2
        // Predicated region
        $region37: #{tpu_custom_call.1} parent=35 // pred_check
          %p192 = pneg %p68
        $region38: #{tpu_custom_call.1} parent=35 // pred_check_branch
          %194 = sbr.rel (%p192) target = $region40
        $region39: #{tpu_custom_call.1} parent=35 // pred_region
          %s195 = sand.u32 %s53, 1
          %s196 = scalar_lea.sflag [#allocation4], %s195
          %s197 = sand.u32 %s53, 1
          %s198 = smul.addr %s197, 128
          %s199 = scalar_lea.vmem [#allocation5], %s198
          %201 = dma.done %s196, 2048
        $region40: #{tpu_custom_call.1} parent=35 // pred_fallthru
          _
      $region36: #{tpu_custom_call.1} parent=5 // pred_fallthru
        _
    $region6: #{tpu_custom_call.1} parent=1 // loop_footer
      %s17 = sadd.s32 1, %s13
    $region7: #{tpu_custom_call.1} parent=1 // loop_footer_branch
      %12 = sbr.rel target = $region3
    $region8: #{tpu_custom_call.1} parent=1 // loop_exit
      _
    %202 = vsyncpa [#allocation3], 1
    %s203 = scalar_lea.sflag [#allocation3], 1
    %204 = vsyncpa %s203, 1
    %205 = vsyncpa [#allocation4], 1
    %s206 = scalar_lea.sflag [#allocation4], 1
    %207 = vsyncpa %s206, 1

</llo_original>
